<compile_context>
chip_gen: v7x
topology: tpu7x:2x2x1
jax: 0.10.0
libtpu: 0.0.40
codegen_flags: <defaults>
</compile_context>

<pallas_src>
import jax
import jax.numpy as jnp
from jax.experimental import pallas as pl
from jax.experimental.pallas import tpu as pltpu

_LANE = 128


def _h_swish_kernel(x_ref, o_ref):
    # h_sigmoid(x) = ReLU6(x + 3) / 6 ; h_swish(x) = x * h_sigmoid(x).
    # Bandwidth-bound kernel -> f32 math is free and avoids bf16 rounding.
    x = x_ref[...].astype(jnp.float32)
    hs = jnp.clip(x + 3.0, 0.0, 6.0) * (1.0 / 6.0)
    o_ref[...] = (x * hs).astype(o_ref.dtype)


def _h_swish_jnp(x):
    xf = x.astype(jnp.float32)
    return (xf * (jnp.clip(xf + 3.0, 0.0, 6.0) * (1.0 / 6.0))).astype(x.dtype)


def _chip_tuning():
    """(target_block_bytes, vmem_limit_bytes, tensorcores_per_chip) per TPU gen."""
    kind = ""
    try:
        kind = jax.devices()[0].device_kind.lower()
    except Exception:
        pass
    if "7" in kind:
        # v7x: 3.2 TB/s HBM makes the ~0.35us/grid-step overhead visible ->
        # bigger blocks; 2 TCs share the grid; 64 MiB physical VMEM per TC so
        # raise the scoped limit but stay well under physical.
        return 4 * 1024 * 1024, 48 * 1024 * 1024, 2
    if "v6" in kind or "6e" in kind or "trillium" in kind:
        # v6e: 32 MiB scoped default / 128 MiB physical.
        return 4 * 1024 * 1024, 64 * 1024 * 1024, 1
    # v5e / unknown: 16 MiB scoped-VMEM default -> keep the double-buffered
    # footprint (2 in + 2 out blocks) at ~8 MiB.
    return 2 * 1024 * 1024, None, 1


def _choose_2d(n, sublane):
    """Lane-dense (cols, rows) view of a 128-aligned flat length n."""
    best = None
    for cols in (2048, 1024, 512, 256, 128):
        if n % cols == 0:
            rows = n // cols
            if rows % sublane == 0:
                return cols, rows
            if best is None:
                best = (cols, rows)
    return best  # n is 128-aligned, so cols=128 always divides -> never None.


def _round_up(v, m):
    return -(-v // m) * m


def _h_swish_aligned_flat(flat, n):
    """Runs the Pallas kernel over a flat array whose length is a multiple of 128."""
    dtype = flat.dtype
    itemsize = jnp.dtype(dtype).itemsize
    # Sub-32-bit dtypes pack along sublanes: f32 -> 8 rows/vreg, bf16 -> 16, i8 -> 32.
    sublane = max(8, 32 // itemsize)
    target_block_bytes, vmem_limit, n_cores = _chip_tuning()

    cols, rows = _choose_2d(n, sublane)
    x2d = flat.reshape(rows, cols)

    tile_rows = max(sublane, target_block_bytes // (cols * itemsize))
    tile_rows = (tile_rows // sublane) * sublane

    if tile_rows >= rows:
        if n_cores > 1 and rows >= 2 * sublane:
            # Keep both v7x TensorCores busy even for "one-block" arrays.
            tile_rows = _round_up(-(-rows // 2), sublane)
        else:
            tile_rows = rows  # single full-array block (full-dim block is legal)
    else:
        grid_len = -(-rows // tile_rows)
        if n_cores > 1 and grid_len % n_cores != 0:
            # Make the grid length a multiple of the TC count (avoid 2:1 imbalance).
            grid_len += n_cores - grid_len % n_cores
            tile_rows = max(sublane, _round_up(-(-rows // grid_len), sublane))

    grid = (pl.cdiv(rows, tile_rows),)

    out2d = pl.pallas_call(
        _h_swish_kernel,
        out_shape=jax.ShapeDtypeStruct((rows, cols), dtype),
        grid_spec=pltpu.PrefetchScalarGridSpec(
            num_scalar_prefetch=0,
            grid=grid,
            in_specs=[pl.BlockSpec((tile_rows, cols), lambda i: (i, 0))],
            out_specs=pl.BlockSpec((tile_rows, cols), lambda i: (i, 0)),
        ),
        compiler_params=pltpu.CompilerParams(
            dimension_semantics=("parallel",),
            vmem_limit_bytes=vmem_limit,
        ),
        cost_estimate=pl.CostEstimate(
            flops=4 * n,
            transcendentals=0,
            bytes_accessed=2 * n * itemsize,
        ),
    )(x2d)
    return out2d.reshape(-1)


@jax.jit
def h_swish(x: jax.Array) -> jax.Array:
    """Applies h_swish elementwise (same semantics as the PyTorch module)."""
    orig_shape = x.shape
    n = x.size
    if n == 0:
        return x
    flat = x.reshape(-1)
    rem = n % _LANE
    if rem == 0:
        out = _h_swish_aligned_flat(flat, n)
    else:
        aligned = n - rem
        if aligned == 0:
            # Fewer than 128 elements: a kernel launch is not worth it.
            return _h_swish_jnp(x)
        # Ragged element count: kernel on the 128-aligned prefix, plain jnp on
        # the (<128-element) tail.  Avoids the old pad-whole-array + re-slice
        # round trip (which tripled HBM traffic on ragged shapes).
        head = _h_swish_aligned_flat(flat[:aligned], aligned)
        tail = _h_swish_jnp(flat[aligned:])
        out = jnp.concatenate([head, tail])
    return out.reshape(orig_shape)


def _h_swish_ref(x):
    xf = x.astype(jnp.float32)
    return xf * (jnp.clip(xf + 3.0, 0.0, 6.0) / 6.0)


if __name__ == "__main__":
    key = jax.random.PRNGKey(0)

    # Main check: NCHW f32, same convention as the PyTorch module.
    x = jax.random.normal(key, (2, 4, 16, 16), dtype=jnp.float32) * 4.0
    y = jax.block_until_ready(h_swish(x))
    y_ref = _h_swish_ref(x)
    assert y.shape == x.shape and y.dtype == x.dtype
    assert jnp.allclose(y, y_ref, atol=1e-6, rtol=1e-6), "f32 mismatch vs reference"

    # bf16 path (loaded bf16, math in f32, stored bf16).
    xb = x.astype(jnp.bfloat16)
    yb = jax.block_until_ready(h_swish(xb))
    assert yb.dtype == jnp.bfloat16
    assert jnp.allclose(yb.astype(jnp.float32),
                        _h_swish_ref(xb),
                        atol=5e-2, rtol=5e-2), "bf16 mismatch vs reference"

    # Ragged path (element count not a multiple of 128): prefix kernel + jnp tail.
    x_odd = jax.random.normal(jax.random.PRNGKey(1), (3, 5, 7, 11), dtype=jnp.float32)
    y_odd = jax.block_until_ready(h_swish(x_odd))
    assert y_odd.shape == x_odd.shape
    assert jnp.allclose(y_odd, _h_swish_ref(x_odd), atol=1e-6, rtol=1e-6), \
        "ragged-path mismatch vs reference"

    print("KERNEL_OK")
</pallas_src>

<mosaic_0001>
module attributes {stable_mosaic.version = 11 : i64} {
  func.func @_h_swish_kernel(%arg0: i32, %arg1: memref<8x256xf32, #tpu.memory_space<vmem>>, %arg2: memref<8x256xf32, #tpu.memory_space<vmem>>) attributes {dimension_semantics = [#tpu.dimension_semantics<parallel>], iteration_bounds = array<i64: 1>, scalar_prefetch = 0 : i64, scratch_operands = 0 : i64, tpu.core_type = #tpu.core_type<tc>, window_params = [{transform_indices = @transform_0, window_bounds = array<i64: 8, 256>}, {transform_indices = @transform_1, window_bounds = array<i64: 8, 256>}]} {
    %c0 = arith.constant 0 : index
    %c0_0 = arith.constant 0 : index
    %0 = vector.load %arg1[%c0, %c0_0] : memref<8x256xf32, #tpu.memory_space<vmem>>, vector<8x256xf32>
    %cst = arith.constant 3.000000e+00 : f32
    %1 = vector.broadcast %cst : f32 to vector<8x256xf32>
    %2 = arith.addf %0, %1 : vector<8x256xf32>
    %cst_1 = arith.constant 0.000000e+00 : f32
    %cst_2 = arith.constant 6.000000e+00 : f32
    %3 = vector.broadcast %cst_1 : f32 to vector<8x256xf32>
    %4 = arith.maximumf %3, %2 : vector<8x256xf32>
    %5 = vector.broadcast %cst_2 : f32 to vector<8x256xf32>
    %6 = arith.minimumf %5, %4 : vector<8x256xf32>
    %cst_3 = arith.constant 0.166666672 : f32
    %7 = vector.broadcast %cst_3 : f32 to vector<8x256xf32>
    %8 = arith.mulf %6, %7 : vector<8x256xf32>
    %9 = arith.mulf %0, %8 : vector<8x256xf32>
    %c0_4 = arith.constant 0 : index
    %c0_5 = arith.constant 0 : index
    %10 = vector.load %arg2[%c0_4, %c0_5] : memref<8x256xf32, #tpu.memory_space<vmem>>, vector<8x256xf32>
    tpu.vector_store %arg2[%c0_4, %c0_5], %9 {strides = array<i32>} : memref<8x256xf32, #tpu.memory_space<vmem>>, vector<8x256xf32>,
    return
  }
  func.func @transform_0(%arg0: i32) -> (i32, i32) {
    %c0_i32 = arith.constant 0 : i32
    %c0_i32_0 = arith.constant 0 : i32
    return %arg0, %c0_i32 : i32, i32
  }
  func.func @transform_1(%arg0: i32) -> (i32, i32) {
    %c0_i32 = arith.constant 0 : i32
    %c0_i32_0 = arith.constant 0 : i32
    return %arg0, %c0_i32 : i32, i32
  }
}

</mosaic_0001>

<llo_original>
// kernel: h_swish.1
$region0: #{h_swish.1}
  #allocation0 [shape = 'u32[]', space=smem, size = 0x4, offset = 0x4, fixed_abs, tag = 'smem constant byte address 0x4 - core index']
  #allocation1 [shape = 'u32[144,128]{1,0:T(1,128)}', space=vmem, size = 0x12000, scoped, tag = 'internal scratch']
  %s0 = inlined_call_operand.vmem [shape: f32[8,256], index: 0, kind: input, shape index: {}]
  %s1 = inlined_call_operand.vmem [shape: f32[8,256], index: 1, kind: output, shape index: {}]
  %s2 = sld [smem:[#allocation0]]
  $region14: #{h_swish.1} parent=0
    _
  %s4 = ssub.s32 1, %s2
  %s5 = scalar_select 0, %s4, %s2
  // Predicated region
  $region2: #{h_swish.1} parent=0 // pred_check
    _
  $region3: #{h_swish.1} parent=0 // pred_check_branch
    %7 = sbr.rel (0) target = $region5
  $region4: #{h_swish.1} parent=0 // pred_region
    _
  $region5: #{h_swish.1} parent=0 // pred_fallthru
    _
  %v8 = vld [vmem:[%s0] sm:$0xff]
  %v9 = vld [vmem:[%s0 + $0x8] sm:$0xff]
  %v10 = vadd.f32 %v8, 3.0
  %v11 = vadd.f32 %v9, 3.0
  %v12 = vmax.f32 %v10, 0.0
  %v13 = vmax.f32 %v11, 0.0
  %v14 = vmin.f32 %v12, 6.0
  %v15 = vmin.f32 %v13, 6.0
  %v16 = vmul.f32 %v14, 0.16666667
  %v17 = vmul.f32 %v15, 0.16666667
  %v18 = vmul.f32 %v8, %v16
  %v19 = vmul.f32 %v9, %v17
  %20 = vst [vmem:[%s1] sm:$0xff] %v18
  %21 = vst [vmem:[%s1 + $0x8] sm:$0xff] %v19
  // Predicated region
  $region6: #{h_swish.1} parent=0 // pred_check
    _
  $region7: #{h_swish.1} parent=0 // pred_check_branch
    %23 = sbr.rel (0) target = $region9
  $region8: #{h_swish.1} parent=0 // pred_region
    _
  $region9: #{h_swish.1} parent=0 // pred_fallthru
    _
  // Predicated region
  $region10: #{h_swish.1} parent=0 // pred_check
    _
  $region11: #{h_swish.1} parent=0 // pred_check_branch
    %25 = sbr.rel (0) target = $region13
  $region12: #{h_swish.1} parent=0 // pred_region
    _
  $region13: #{h_swish.1} parent=0 // pred_fallthru
    _

</llo_original>
